<compile_context>
chip_gen: v6e
topology: v6e:2x2x1
jax: 0.10.0
libtpu: 0.0.40
codegen_flags: <defaults>
</compile_context>

<pallas_src>
import functools

import jax
import jax.numpy as jnp
from jax import lax
from jax.experimental import pallas as pl
from jax.experimental.pallas import tpu as pltpu


def _atrous_conv_kernel(x_ref, w_ref, o_ref, xf_ref, col_ref, *,
                        H, W, KH, KW, Cin, dilation, pad, Wp, n_strip):
    # x_ref:   (1, Cin, H*W)         one batch element, NCHW flattened (VMEM)
    # w_ref:   (Cout, Cin*KH*KW)     conv weight, OIHW flattened (VMEM)
    # o_ref:   (1, Cout, Hout*Wp)    lane-dense "strip" output block
    # xf_ref:  (Cin, Hp*Wp)          zero-padded image, flattened per channel
    # col_ref: (Cin*KH*KW, n_strip)  im2col strips, one row per weight tap

    # Build the zero-padded, flattened image in VMEM.  (Re-zeroed every grid
    # step: scratch persists across steps and a program_id==0 guard would be
    # wrong under "parallel" scheduling on multi-TC chips; the cost is tiny.)
    xf_ref[...] = jnp.zeros_like(xf_ref)
    for h in range(H):
        dst = (pad + h) * Wp + pad
        xf_ref[:, dst:dst + W] = x_ref[0, :, h * W:(h + 1) * W]

    # im2col as contiguous strips of the flat padded image: for tap (kh, kw)
    # the element needed by output pixel (ho, wo) sits at flat offset
    # (kh*d)*Wp + kw*d + ho*Wp + wo, i.e. a single contiguous slice per tap.
    for c in range(Cin):
        for kh in range(KH):
            for kw in range(KW):
                r = (c * KH + kh) * KW + kw            # matches OIHW reshape
                off = (kh * dilation) * Wp + kw * dilation
                col_ref[r:r + 1, :] = xf_ref[c:c + 1, off:off + n_strip]

    # One MXU contraction over all taps and input channels.
    acc = jnp.dot(w_ref[...], col_ref[...],
                  preferred_element_type=jnp.float32)   # (Cout, n_strip)

    o_ref[0, :, :n_strip] = acc.astype(o_ref.dtype)
    tail = o_ref.shape[2] - n_strip
    if tail > 0:  # never read back (wrapper slices it away); keep deterministic
        o_ref[0, :, n_strip:] = jnp.zeros((o_ref.shape[1], tail),
                                          dtype=o_ref.dtype)


def atrous_conv2d(x_nchw, weight_oihw, *, dilation=1):
    """AtrousConv2D forward: dilated conv2d, stride=1, padding=dilation, no bias.

    Input x is NCHW, weight is OIHW (PyTorch layouts); output is NCHW.
    """
    B, Cin, H, W = x_nchw.shape
    Cout, Cin_w, KH, KW = weight_oihw.shape
    assert Cin == Cin_w
    pad = dilation
    d = dilation

    # PyTorch output size for stride=1, padding=dilation.
    Hout = H + 2 * pad - d * (KH - 1)
    Wout = W + 2 * pad - d * (KW - 1)
    assert Hout > 0 and Wout > 0

    Hp, Wp = H + 2 * pad, W + 2 * pad
    n_strip = (Hout - 1) * Wp + Wout       # length of one shifted strip row
    T = Cin * KH * KW

    # Free, memory-order-preserving reshapes (no HBM copies / transposes).
    x_flat = x_nchw.reshape(B, Cin, H * W)
    w2d = weight_oihw.reshape(Cout, T)
    # NOTE: on v6e/v7x one could cast x_flat/w2d to bfloat16 (keeping the f32
    # MXU accumulate) for higher MXU throughput; kept f32 here to preserve the
    # module's f32 numerics.

    kernel = functools.partial(
        _atrous_conv_kernel,
        H=H, W=W, KH=KH, KW=KW, Cin=Cin,
        dilation=d, pad=pad, Wp=Wp, n_strip=n_strip)

    out_strip = pl.pallas_call(
        kernel,
        out_shape=jax.ShapeDtypeStruct((B, Cout, Hout * Wp), x_nchw.dtype),
        grid_spec=pltpu.PrefetchScalarGridSpec(
            num_scalar_prefetch=0,
            grid=(B,),
            in_specs=[
                pl.BlockSpec((1, Cin, H * W), lambda b: (b, 0, 0)),
                pl.BlockSpec((Cout, T), lambda b: (0, 0)),
            ],
            out_specs=pl.BlockSpec((1, Cout, Hout * Wp), lambda b: (b, 0, 0)),
            scratch_shapes=[
                pltpu.VMEM((Cin, Hp * Wp), jnp.float32),
                pltpu.VMEM((T, n_strip), jnp.float32),
            ],
        ),
        compiler_params=pltpu.CompilerParams(
            dimension_semantics=("parallel",)),
    )(x_flat, w2d)

    # Strip layout -> NCHW: free reshape + cheap strided slice of the
    # (Wp - Wout) padding columns.
    out = out_strip.reshape(B, Cout, Hout, Wp)[..., :Wout]
    return out


if __name__ == "__main__":
    # Module config: AtrousConv2D(in=4, out=8, kernel_size=3, dilation=2)
    B, Cin, H, W = 2, 4, 16, 16
    Cout, K, dilation = 8, 3, 2

    key = jax.random.PRNGKey(0)
    kx, kw = jax.random.split(key)
    x = jax.random.normal(kx, (B, Cin, H, W), dtype=jnp.float32)
    # Deterministic synthetic weight in PyTorch Conv2d layout (Cout, Cin, KH, KW).
    w = jax.random.normal(kw, (Cout, Cin, K, K), dtype=jnp.float32) * 0.1

    out = atrous_conv2d(x, w, dilation=dilation)
    out = jax.block_until_ready(out)

    # Reference check against XLA's dilated conv (same semantics as nn.Conv2d).
    ref = lax.conv_general_dilated(
        x, w, window_strides=(1, 1),
        padding=((dilation, dilation), (dilation, dilation)),
        rhs_dilation=(dilation, dilation),
        dimension_numbers=("NCHW", "OIHW", "NCHW"))
    assert out.shape == (B, Cout, H, W)
    assert jnp.allclose(out, ref, atol=1e-4, rtol=1e-4)

    print("KERNEL_OK")
</pallas_src>

<mosaic_0001>
module attributes {stable_mosaic.version = 11 : i64} {
  func.func @_atrous_conv_kernel(%arg0: i32, %arg1: memref<1x4x256xf32, #tpu.memory_space<vmem>>, %arg2: memref<8x36xf32, #tpu.memory_space<vmem>>, %arg3: memref<1x8x320xf32, #tpu.memory_space<vmem>>, %arg4: memref<4x400xf32, #tpu.memory_space<vmem>>, %arg5: memref<36x316xf32, #tpu.memory_space<vmem>>) attributes {dimension_semantics = [#tpu.dimension_semantics<parallel>], iteration_bounds = array<i64: 2>, scalar_prefetch = 0 : i64, scratch_operands = 2 : i64, tpu.core_type = #tpu.core_type<tc>, window_params = [{transform_indices = @transform_0, window_bounds = array<i64: 1, 4, 256>}, {pipeline_mode = #tpu.pipeline_mode<synchronous>, transform_indices = @transform_1, window_bounds = array<i64: 8, 36>}, {transform_indices = @transform_2, window_bounds = array<i64: 1, 8, 320>}]} {
    %cst = arith.constant 0.000000e+00 : f32
    %0 = vector.broadcast %cst : f32 to vector<4x400xf32>
    %c0 = arith.constant 0 : index
    %c0_0 = arith.constant 0 : index
    %1 = vector.load %arg4[%c0, %c0_0] : memref<4x400xf32, #tpu.memory_space<vmem>>, vector<4x400xf32>
    tpu.vector_store %arg4[%c0, %c0_0], %0 {strides = array<i32>} : memref<4x400xf32, #tpu.memory_space<vmem>>, vector<4x400xf32>,
    %c0_1 = arith.constant 0 : index
    %c0_2 = arith.constant 0 : index
    %c0_3 = arith.constant 0 : index
    %2 = vector.load %arg1[%c0_1, %c0_2, %c0_3] : memref<1x4x256xf32, #tpu.memory_space<vmem>>, vector<1x4x16xf32>
    %3 = vector.shape_cast %2 : vector<1x4x16xf32> to vector<4x16xf32>
    %c0_4 = arith.constant 0 : index
    %c42 = arith.constant 42 : index
    %4 = vector.load %arg4[%c0_4, %c42] : memref<4x400xf32, #tpu.memory_space<vmem>>, vector<4x16xf32>
    tpu.vector_store %arg4[%c0_4, %c42], %3 {strides = array<i32>} : memref<4x400xf32, #tpu.memory_space<vmem>>, vector<4x16xf32>,
    %c0_5 = arith.constant 0 : index
    %c0_6 = arith.constant 0 : index
    %c16 = arith.constant 16 : index
    %5 = vector.load %arg1[%c0_5, %c0_6, %c16] : memref<1x4x256xf32, #tpu.memory_space<vmem>>, vector<1x4x16xf32>
    %6 = vector.shape_cast %5 : vector<1x4x16xf32> to vector<4x16xf32>
    %c0_7 = arith.constant 0 : index
    %c62 = arith.constant 62 : index
    %7 = vector.load %arg4[%c0_7, %c62] : memref<4x400xf32, #tpu.memory_space<vmem>>, vector<4x16xf32>
    tpu.vector_store %arg4[%c0_7, %c62], %6 {strides = array<i32>} : memref<4x400xf32, #tpu.memory_space<vmem>>, vector<4x16xf32>,
    %c0_8 = arith.constant 0 : index
    %c0_9 = arith.constant 0 : index
    %c32 = arith.constant 32 : index
    %8 = vector.load %arg1[%c0_8, %c0_9, %c32] : memref<1x4x256xf32, #tpu.memory_space<vmem>>, vector<1x4x16xf32>
    %9 = vector.shape_cast %8 : vector<1x4x16xf32> to vector<4x16xf32>
    %c0_10 = arith.constant 0 : index
    %c82 = arith.constant 82 : index
    %10 = vector.load %arg4[%c0_10, %c82] : memref<4x400xf32, #tpu.memory_space<vmem>>, vector<4x16xf32>
    tpu.vector_store %arg4[%c0_10, %c82], %9 {strides = array<i32>} : memref<4x400xf32, #tpu.memory_space<vmem>>, vector<4x16xf32>,
    %c0_11 = arith.constant 0 : index
    %c0_12 = arith.constant 0 : index
    %c48 = arith.constant 48 : index
    %11 = vector.load %arg1[%c0_11, %c0_12, %c48] : memref<1x4x256xf32, #tpu.memory_space<vmem>>, vector<1x4x16xf32>
    %12 = vector.shape_cast %11 : vector<1x4x16xf32> to vector<4x16xf32>
    %c0_13 = arith.constant 0 : index
    %c102 = arith.constant 102 : index
    %13 = vector.load %arg4[%c0_13, %c102] : memref<4x400xf32, #tpu.memory_space<vmem>>, vector<4x16xf32>
    tpu.vector_store %arg4[%c0_13, %c102], %12 {strides = array<i32>} : memref<4x400xf32, #tpu.memory_space<vmem>>, vector<4x16xf32>,
    %c0_14 = arith.constant 0 : index
    %c0_15 = arith.constant 0 : index
    %c64 = arith.constant 64 : index
    %14 = vector.load %arg1[%c0_14, %c0_15, %c64] : memref<1x4x256xf32, #tpu.memory_space<vmem>>, vector<1x4x16xf32>
    %15 = vector.shape_cast %14 : vector<1x4x16xf32> to vector<4x16xf32>
    %c0_16 = arith.constant 0 : index
    %c122 = arith.constant 122 : index
    %16 = vector.load %arg4[%c0_16, %c122] : memref<4x400xf32, #tpu.memory_space<vmem>>, vector<4x16xf32>
    tpu.vector_store %arg4[%c0_16, %c122], %15 {strides = array<i32>} : memref<4x400xf32, #tpu.memory_space<vmem>>, vector<4x16xf32>,
    %c0_17 = arith.constant 0 : index
    %c0_18 = arith.constant 0 : index
    %c80 = arith.constant 80 : index
    %17 = vector.load %arg1[%c0_17, %c0_18, %c80] : memref<1x4x256xf32, #tpu.memory_space<vmem>>, vector<1x4x16xf32>
    %18 = vector.shape_cast %17 : vector<1x4x16xf32> to vector<4x16xf32>
    %c0_19 = arith.constant 0 : index
    %c142 = arith.constant 142 : index
    %19 = vector.load %arg4[%c0_19, %c142] : memref<4x400xf32, #tpu.memory_space<vmem>>, vector<4x16xf32>
    tpu.vector_store %arg4[%c0_19, %c142], %18 {strides = array<i32>} : memref<4x400xf32, #tpu.memory_space<vmem>>, vector<4x16xf32>,
    %c0_20 = arith.constant 0 : index
    %c0_21 = arith.constant 0 : index
    %c96 = arith.constant 96 : index
    %20 = vector.load %arg1[%c0_20, %c0_21, %c96] : memref<1x4x256xf32, #tpu.memory_space<vmem>>, vector<1x4x16xf32>
    %21 = vector.shape_cast %20 : vector<1x4x16xf32> to vector<4x16xf32>
    %c0_22 = arith.constant 0 : index
    %c162 = arith.constant 162 : index
    %22 = vector.load %arg4[%c0_22, %c162] : memref<4x400xf32, #tpu.memory_space<vmem>>, vector<4x16xf32>
    tpu.vector_store %arg4[%c0_22, %c162], %21 {strides = array<i32>} : memref<4x400xf32, #tpu.memory_space<vmem>>, vector<4x16xf32>,
    %c0_23 = arith.constant 0 : index
    %c0_24 = arith.constant 0 : index
    %c112 = arith.constant 112 : index
    %23 = vector.load %arg1[%c0_23, %c0_24, %c112] : memref<1x4x256xf32, #tpu.memory_space<vmem>>, vector<1x4x16xf32>
    %24 = vector.shape_cast %23 : vector<1x4x16xf32> to vector<4x16xf32>
    %c0_25 = arith.constant 0 : index
    %c182 = arith.constant 182 : index
    %25 = vector.load %arg4[%c0_25, %c182] : memref<4x400xf32, #tpu.memory_space<vmem>>, vector<4x16xf32>
    tpu.vector_store %arg4[%c0_25, %c182], %24 {strides = array<i32>} : memref<4x400xf32, #tpu.memory_space<vmem>>, vector<4x16xf32>,
    %c0_26 = arith.constant 0 : index
    %c0_27 = arith.constant 0 : index
    %c128 = arith.constant 128 : index
    %26 = vector.load %arg1[%c0_26, %c0_27, %c128] : memref<1x4x256xf32, #tpu.memory_space<vmem>>, vector<1x4x16xf32>
    %27 = vector.shape_cast %26 : vector<1x4x16xf32> to vector<4x16xf32>
    %c0_28 = arith.constant 0 : index
    %c202 = arith.constant 202 : index
    %28 = vector.load %arg4[%c0_28, %c202] : memref<4x400xf32, #tpu.memory_space<vmem>>, vector<4x16xf32>
    tpu.vector_store %arg4[%c0_28, %c202], %27 {strides = array<i32>} : memref<4x400xf32, #tpu.memory_space<vmem>>, vector<4x16xf32>,
    %c0_29 = arith.constant 0 : index
    %c0_30 = arith.constant 0 : index
    %c144 = arith.constant 144 : index
    %29 = vector.load %arg1[%c0_29, %c0_30, %c144] : memref<1x4x256xf32, #tpu.memory_space<vmem>>, vector<1x4x16xf32>
    %30 = vector.shape_cast %29 : vector<1x4x16xf32> to vector<4x16xf32>
    %c0_31 = arith.constant 0 : index
    %c222 = arith.constant 222 : index
    %31 = vector.load %arg4[%c0_31, %c222] : memref<4x400xf32, #tpu.memory_space<vmem>>, vector<4x16xf32>
    tpu.vector_store %arg4[%c0_31, %c222], %30 {strides = array<i32>} : memref<4x400xf32, #tpu.memory_space<vmem>>, vector<4x16xf32>,
    %c0_32 = arith.constant 0 : index
    %c0_33 = arith.constant 0 : index
    %c160 = arith.constant 160 : index
    %32 = vector.load %arg1[%c0_32, %c0_33, %c160] : memref<1x4x256xf32, #tpu.memory_space<vmem>>, vector<1x4x16xf32>
    %33 = vector.shape_cast %32 : vector<1x4x16xf32> to vector<4x16xf32>
    %c0_34 = arith.constant 0 : index
    %c242 = arith.constant 242 : index
    %34 = vector.load %arg4[%c0_34, %c242] : memref<4x400xf32, #tpu.memory_space<vmem>>, vector<4x16xf32>
    tpu.vector_store %arg4[%c0_34, %c242], %33 {strides = array<i32>} : memref<4x400xf32, #tpu.memory_space<vmem>>, vector<4x16xf32>,
    %c0_35 = arith.constant 0 : index
    %c0_36 = arith.constant 0 : index
    %c176 = arith.constant 176 : index
    %35 = vector.load %arg1[%c0_35, %c0_36, %c176] : memref<1x4x256xf32, #tpu.memory_space<vmem>>, vector<1x4x16xf32>
    %36 = vector.shape_cast %35 : vector<1x4x16xf32> to vector<4x16xf32>
    %c0_37 = arith.constant 0 : index
    %c262 = arith.constant 262 : index
    %37 = vector.load %arg4[%c0_37, %c262] : memref<4x400xf32, #tpu.memory_space<vmem>>, vector<4x16xf32>
    tpu.vector_store %arg4[%c0_37, %c262], %36 {strides = array<i32>} : memref<4x400xf32, #tpu.memory_space<vmem>>, vector<4x16xf32>,
    %c0_38 = arith.constant 0 : index
    %c0_39 = arith.constant 0 : index
    %c192 = arith.constant 192 : index
    %38 = vector.load %arg1[%c0_38, %c0_39, %c192] : memref<1x4x256xf32, #tpu.memory_space<vmem>>, vector<1x4x16xf32>
    %39 = vector.shape_cast %38 : vector<1x4x16xf32> to vector<4x16xf32>
    %c0_40 = arith.constant 0 : index
    %c282 = arith.constant 282 : index
    %40 = vector.load %arg4[%c0_40, %c282] : memref<4x400xf32, #tpu.memory_space<vmem>>, vector<4x16xf32>
    tpu.vector_store %arg4[%c0_40, %c282], %39 {strides = array<i32>} : memref<4x400xf32, #tpu.memory_space<vmem>>, vector<4x16xf32>,
    %c0_41 = arith.constant 0 : index
    %c0_42 = arith.constant 0 : index
    %c208 = arith.constant 208 : index
    %41 = vector.load %arg1[%c0_41, %c0_42, %c208] : memref<1x4x256xf32, #tpu.memory_space<vmem>>, vector<1x4x16xf32>
    %42 = vector.shape_cast %41 : vector<1x4x16xf32> to vector<4x16xf32>
    %c0_43 = arith.constant 0 : index
    %c302 = arith.constant 302 : index
    %43 = vector.load %arg4[%c0_43, %c302] : memref<4x400xf32, #tpu.memory_space<vmem>>, vector<4x16xf32>
    tpu.vector_store %arg4[%c0_43, %c302], %42 {strides = array<i32>} : memref<4x400xf32, #tpu.memory_space<vmem>>, vector<4x16xf32>,
    %c0_44 = arith.constant 0 : index
    %c0_45 = arith.constant 0 : index
    %c224 = arith.constant 224 : index
    %44 = vector.load %arg1[%c0_44, %c0_45, %c224] : memref<1x4x256xf32, #tpu.memory_space<vmem>>, vector<1x4x16xf32>
    %45 = vector.shape_cast %44 : vector<1x4x16xf32> to vector<4x16xf32>
    %c0_46 = arith.constant 0 : index
    %c322 = arith.constant 322 : index
    %46 = vector.load %arg4[%c0_46, %c322] : memref<4x400xf32, #tpu.memory_space<vmem>>, vector<4x16xf32>
    tpu.vector_store %arg4[%c0_46, %c322], %45 {strides = array<i32>} : memref<4x400xf32, #tpu.memory_space<vmem>>, vector<4x16xf32>,
    %c0_47 = arith.constant 0 : index
    %c0_48 = arith.constant 0 : index
    %c240 = arith.constant 240 : index
    %47 = vector.load %arg1[%c0_47, %c0_48, %c240] : memref<1x4x256xf32, #tpu.memory_space<vmem>>, vector<1x4x16xf32>
    %48 = vector.shape_cast %47 : vector<1x4x16xf32> to vector<4x16xf32>
    %c0_49 = arith.constant 0 : index
    %c342 = arith.constant 342 : index
    %49 = vector.load %arg4[%c0_49, %c342] : memref<4x400xf32, #tpu.memory_space<vmem>>, vector<4x16xf32>
    tpu.vector_store %arg4[%c0_49, %c342], %48 {strides = array<i32>} : memref<4x400xf32, #tpu.memory_space<vmem>>, vector<4x16xf32>,
    %c0_50 = arith.constant 0 : index
    %c0_51 = arith.constant 0 : index
    %50 = vector.load %arg4[%c0_50, %c0_51] : memref<4x400xf32, #tpu.memory_space<vmem>>, vector<1x316xf32>
    %c0_52 = arith.constant 0 : index
    %c0_53 = arith.constant 0 : index
    %51 = vector.load %arg5[%c0_52, %c0_53] : memref<36x316xf32, #tpu.memory_space<vmem>>, vector<1x316xf32>
    tpu.vector_store %arg5[%c0_52, %c0_53], %50 {strides = array<i32>} : memref<36x316xf32, #tpu.memory_space<vmem>>, vector<1x316xf32>,
    %c0_54 = arith.constant 0 : index
    %c2 = arith.constant 2 : index
    %52 = vector.load %arg4[%c0_54, %c2] : memref<4x400xf32, #tpu.memory_space<vmem>>, vector<1x316xf32>
    %c1 = arith.constant 1 : index
    %c0_55 = arith.constant 0 : index
    %53 = vector.load %arg5[%c1, %c0_55] : memref<36x316xf32, #tpu.memory_space<vmem>>, vector<1x316xf32>
    tpu.vector_store %arg5[%c1, %c0_55], %52 {strides = array<i32>} : memref<36x316xf32, #tpu.memory_space<vmem>>, vector<1x316xf32>,
    %c0_56 = arith.constant 0 : index
    %c4 = arith.constant 4 : index
    %54 = vector.load %arg4[%c0_56, %c4] : memref<4x400xf32, #tpu.memory_space<vmem>>, vector<1x316xf32>
    %c2_57 = arith.constant 2 : index
    %c0_58 = arith.constant 0 : index
    %55 = vector.load %arg5[%c2_57, %c0_58] : memref<36x316xf32, #tpu.memory_space<vmem>>, vector<1x316xf32>
    tpu.vector_store %arg5[%c2_57, %c0_58], %54 {strides = array<i32>} : memref<36x316xf32, #tpu.memory_space<vmem>>, vector<1x316xf32>,
    %c0_59 = arith.constant 0 : index
    %c40 = arith.constant 40 : index
    %56 = vector.load %arg4[%c0_59, %c40] : memref<4x400xf32, #tpu.memory_space<vmem>>, vector<1x316xf32>
    %c3 = arith.constant 3 : index
    %c0_60 = arith.constant 0 : index
    %57 = vector.load %arg5[%c3, %c0_60] : memref<36x316xf32, #tpu.memory_space<vmem>>, vector<1x316xf32>
    tpu.vector_store %arg5[%c3, %c0_60], %56 {strides = array<i32>} : memref<36x316xf32, #tpu.memory_space<vmem>>, vector<1x316xf32>,
    %c0_61 = arith.constant 0 : index
    %c42_62 = arith.constant 42 : index
    %58 = vector.load %arg4[%c0_61, %c42_62] : memref<4x400xf32, #tpu.memory_space<vmem>>, vector<1x316xf32>
    %c4_63 = arith.constant 4 : index
    %c0_64 = arith.constant 0 : index
    %59 = vector.load %arg5[%c4_63, %c0_64] : memref<36x316xf32, #tpu.memory_space<vmem>>, vector<1x316xf32>
    tpu.vector_store %arg5[%c4_63, %c0_64], %58 {strides = array<i32>} : memref<36x316xf32, #tpu.memory_space<vmem>>, vector<1x316xf32>,
    %c0_65 = arith.constant 0 : index
    %c44 = arith.constant 44 : index
    %60 = vector.load %arg4[%c0_65, %c44] : memref<4x400xf32, #tpu.memory_space<vmem>>, vector<1x316xf32>
    %c5 = arith.constant 5 : index
    %c0_66 = arith.constant 0 : index
    %61 = vector.load %arg5[%c5, %c0_66] : memref<36x316xf32, #tpu.memory_space<vmem>>, vector<1x316xf32>
    tpu.vector_store %arg5[%c5, %c0_66], %60 {strides = array<i32>} : memref<36x316xf32, #tpu.memory_space<vmem>>, vector<1x316xf32>,
    %c0_67 = arith.constant 0 : index
    %c80_68 = arith.constant 80 : index
    %62 = vector.load %arg4[%c0_67, %c80_68] : memref<4x400xf32, #tpu.memory_space<vmem>>, vector<1x316xf32>
    %c6 = arith.constant 6 : index
    %c0_69 = arith.constant 0 : index
    %63 = vector.load %arg5[%c6, %c0_69] : memref<36x316xf32, #tpu.memory_space<vmem>>, vector<1x316xf32>
    tpu.vector_store %arg5[%c6, %c0_69], %62 {strides = array<i32>} : memref<36x316xf32, #tpu.memory_space<vmem>>, vector<1x316xf32>,
    %c0_70 = arith.constant 0 : index
    %c82_71 = arith.constant 82 : index
    %64 = vector.load %arg4[%c0_70, %c82_71] : memref<4x400xf32, #tpu.memory_space<vmem>>, vector<1x316xf32>
    %c7 = arith.constant 7 : index
    %c0_72 = arith.constant 0 : index
    %65 = vector.load %arg5[%c7, %c0_72] : memref<36x316xf32, #tpu.memory_space<vmem>>, vector<1x316xf32>
    tpu.vector_store %arg5[%c7, %c0_72], %64 {strides = array<i32>} : memref<36x316xf32, #tpu.memory_space<vmem>>, vector<1x316xf32>,
    %c0_73 = arith.constant 0 : index
    %c84 = arith.constant 84 : index
    %66 = vector.load %arg4[%c0_73, %c84] : memref<4x400xf32, #tpu.memory_space<vmem>>, vector<1x316xf32>
    %c8 = arith.constant 8 : index
    %c0_74 = arith.constant 0 : index
    %67 = vector.load %arg5[%c8, %c0_74] : memref<36x316xf32, #tpu.memory_space<vmem>>, vector<1x316xf32>
    tpu.vector_store %arg5[%c8, %c0_74], %66 {strides = array<i32>} : memref<36x316xf32, #tpu.memory_space<vmem>>, vector<1x316xf32>,
    %c1_75 = arith.constant 1 : index
    %c0_76 = arith.constant 0 : index
    %68 = vector.load %arg4[%c1_75, %c0_76] : memref<4x400xf32, #tpu.memory_space<vmem>>, vector<1x316xf32>
    %c9 = arith.constant 9 : index
    %c0_77 = arith.constant 0 : index
    %69 = vector.load %arg5[%c9, %c0_77] : memref<36x316xf32, #tpu.memory_space<vmem>>, vector<1x316xf32>
    tpu.vector_store %arg5[%c9, %c0_77], %68 {strides = array<i32>} : memref<36x316xf32, #tpu.memory_space<vmem>>, vector<1x316xf32>,
    %c1_78 = arith.constant 1 : index
    %c2_79 = arith.constant 2 : index
    %70 = vector.load %arg4[%c1_78, %c2_79] : memref<4x400xf32, #tpu.memory_space<vmem>>, vector<1x316xf32>
    %c10 = arith.constant 10 : index
    %c0_80 = arith.constant 0 : index
    %71 = vector.load %arg5[%c10, %c0_80] : memref<36x316xf32, #tpu.memory_space<vmem>>, vector<1x316xf32>
    tpu.vector_store %arg5[%c10, %c0_80], %70 {strides = array<i32>} : memref<36x316xf32, #tpu.memory_space<vmem>>, vector<1x316xf32>,
    %c1_81 = arith.constant 1 : index
    %c4_82 = arith.constant 4 : index
    %72 = vector.load %arg4[%c1_81, %c4_82] : memref<4x400xf32, #tpu.memory_space<vmem>>, vector<1x316xf32>
    %c11 = arith.constant 11 : index
    %c0_83 = arith.constant 0 : index
    %73 = vector.load %arg5[%c11, %c0_83] : memref<36x316xf32, #tpu.memory_space<vmem>>, vector<1x316xf32>
    tpu.vector_store %arg5[%c11, %c0_83], %72 {strides = array<i32>} : memref<36x316xf32, #tpu.memory_space<vmem>>, vector<1x316xf32>,
    %c1_84 = arith.constant 1 : index
    %c40_85 = arith.constant 40 : index
    %74 = vector.load %arg4[%c1_84, %c40_85] : memref<4x400xf32, #tpu.memory_space<vmem>>, vector<1x316xf32>
    %c12 = arith.constant 12 : index
    %c0_86 = arith.constant 0 : index
    %75 = vector.load %arg5[%c12, %c0_86] : memref<36x316xf32, #tpu.memory_space<vmem>>, vector<1x316xf32>
    tpu.vector_store %arg5[%c12, %c0_86], %74 {strides = array<i32>} : memref<36x316xf32, #tpu.memory_space<vmem>>, vector<1x316xf32>,
    %c1_87 = arith.constant 1 : index
    %c42_88 = arith.constant 42 : index
    %76 = vector.load %arg4[%c1_87, %c42_88] : memref<4x400xf32, #tpu.memory_space<vmem>>, vector<1x316xf32>
    %c13 = arith.constant 13 : index
    %c0_89 = arith.constant 0 : index
    %77 = vector.load %arg5[%c13, %c0_89] : memref<36x316xf32, #tpu.memory_space<vmem>>, vector<1x316xf32>
    tpu.vector_store %arg5[%c13, %c0_89], %76 {strides = array<i32>} : memref<36x316xf32, #tpu.memory_space<vmem>>, vector<1x316xf32>,
    %c1_90 = arith.constant 1 : index
    %c44_91 = arith.constant 44 : index
    %78 = vector.load %arg4[%c1_90, %c44_91] : memref<4x400xf32, #tpu.memory_space<vmem>>, vector<1x316xf32>
    %c14 = arith.constant 14 : index
    %c0_92 = arith.constant 0 : index
    %79 = vector.load %arg5[%c14, %c0_92] : memref<36x316xf32, #tpu.memory_space<vmem>>, vector<1x316xf32>
    tpu.vector_store %arg5[%c14, %c0_92], %78 {strides = array<i32>} : memref<36x316xf32, #tpu.memory_space<vmem>>, vector<1x316xf32>,
    %c1_93 = arith.constant 1 : index
    %c80_94 = arith.constant 80 : index
    %80 = vector.load %arg4[%c1_93, %c80_94] : memref<4x400xf32, #tpu.memory_space<vmem>>, vector<1x316xf32>
    %c15 = arith.constant 15 : index
    %c0_95 = arith.constant 0 : index
    %81 = vector.load %arg5[%c15, %c0_95] : memref<36x316xf32, #tpu.memory_space<vmem>>, vector<1x316xf32>
    tpu.vector_store %arg5[%c15, %c0_95], %80 {strides = array<i32>} : memref<36x316xf32, #tpu.memory_space<vmem>>, vector<1x316xf32>,
    %c1_96 = arith.constant 1 : index
    %c82_97 = arith.constant 82 : index
    %82 = vector.load %arg4[%c1_96, %c82_97] : memref<4x400xf32, #tpu.memory_space<vmem>>, vector<1x316xf32>
    %c16_98 = arith.constant 16 : index
    %c0_99 = arith.constant 0 : index
    %83 = vector.load %arg5[%c16_98, %c0_99] : memref<36x316xf32, #tpu.memory_space<vmem>>, vector<1x316xf32>
    tpu.vector_store %arg5[%c16_98, %c0_99], %82 {strides = array<i32>} : memref<36x316xf32, #tpu.memory_space<vmem>>, vector<1x316xf32>,
    %c1_100 = arith.constant 1 : index
    %c84_101 = arith.constant 84 : index
    %84 = vector.load %arg4[%c1_100, %c84_101] : memref<4x400xf32, #tpu.memory_space<vmem>>, vector<1x316xf32>
    %c17 = arith.constant 17 : index
    %c0_102 = arith.constant 0 : index
    %85 = vector.load %arg5[%c17, %c0_102] : memref<36x316xf32, #tpu.memory_space<vmem>>, vector<1x316xf32>
    tpu.vector_store %arg5[%c17, %c0_102], %84 {strides = array<i32>} : memref<36x316xf32, #tpu.memory_space<vmem>>, vector<1x316xf32>,
    %c2_103 = arith.constant 2 : index
    %c0_104 = arith.constant 0 : index
    %86 = vector.load %arg4[%c2_103, %c0_104] : memref<4x400xf32, #tpu.memory_space<vmem>>, vector<1x316xf32>
    %c18 = arith.constant 18 : index
    %c0_105 = arith.constant 0 : index
    %87 = vector.load %arg5[%c18, %c0_105] : memref<36x316xf32, #tpu.memory_space<vmem>>, vector<1x316xf32>
    tpu.vector_store %arg5[%c18, %c0_105], %86 {strides = array<i32>} : memref<36x316xf32, #tpu.memory_space<vmem>>, vector<1x316xf32>,
    %c2_106 = arith.constant 2 : index
    %c2_107 = arith.constant 2 : index
    %88 = vector.load %arg4[%c2_106, %c2_107] : memref<4x400xf32, #tpu.memory_space<vmem>>, vector<1x316xf32>
    %c19 = arith.constant 19 : index
    %c0_108 = arith.constant 0 : index
    %89 = vector.load %arg5[%c19, %c0_108] : memref<36x316xf32, #tpu.memory_space<vmem>>, vector<1x316xf32>
    tpu.vector_store %arg5[%c19, %c0_108], %88 {strides = array<i32>} : memref<36x316xf32, #tpu.memory_space<vmem>>, vector<1x316xf32>,
    %c2_109 = arith.constant 2 : index
    %c4_110 = arith.constant 4 : index
    %90 = vector.load %arg4[%c2_109, %c4_110] : memref<4x400xf32, #tpu.memory_space<vmem>>, vector<1x316xf32>
    %c20 = arith.constant 20 : index
    %c0_111 = arith.constant 0 : index
    %91 = vector.load %arg5[%c20, %c0_111] : memref<36x316xf32, #tpu.memory_space<vmem>>, vector<1x316xf32>
    tpu.vector_store %arg5[%c20, %c0_111], %90 {strides = array<i32>} : memref<36x316xf32, #tpu.memory_space<vmem>>, vector<1x316xf32>,
    %c2_112 = arith.constant 2 : index
    %c40_113 = arith.constant 40 : index
    %92 = vector.load %arg4[%c2_112, %c40_113] : memref<4x400xf32, #tpu.memory_space<vmem>>, vector<1x316xf32>
    %c21 = arith.constant 21 : index
    %c0_114 = arith.constant 0 : index
    %93 = vector.load %arg5[%c21, %c0_114] : memref<36x316xf32, #tpu.memory_space<vmem>>, vector<1x316xf32>
    tpu.vector_store %arg5[%c21, %c0_114], %92 {strides = array<i32>} : memref<36x316xf32, #tpu.memory_space<vmem>>, vector<1x316xf32>,
    %c2_115 = arith.constant 2 : index
    %c42_116 = arith.constant 42 : index
    %94 = vector.load %arg4[%c2_115, %c42_116] : memref<4x400xf32, #tpu.memory_space<vmem>>, vector<1x316xf32>
    %c22 = arith.constant 22 : index
    %c0_117 = arith.constant 0 : index
    %95 = vector.load %arg5[%c22, %c0_117] : memref<36x316xf32, #tpu.memory_space<vmem>>, vector<1x316xf32>
    tpu.vector_store %arg5[%c22, %c0_117], %94 {strides = array<i32>} : memref<36x316xf32, #tpu.memory_space<vmem>>, vector<1x316xf32>,
    %c2_118 = arith.constant 2 : index
    %c44_119 = arith.constant 44 : index
    %96 = vector.load %arg4[%c2_118, %c44_119] : memref<4x400xf32, #tpu.memory_space<vmem>>, vector<1x316xf32>
    %c23 = arith.constant 23 : index
    %c0_120 = arith.constant 0 : index
    %97 = vector.load %arg5[%c23, %c0_120] : memref<36x316xf32, #tpu.memory_space<vmem>>, vector<1x316xf32>
    tpu.vector_store %arg5[%c23, %c0_120], %96 {strides = array<i32>} : memref<36x316xf32, #tpu.memory_space<vmem>>, vector<1x316xf32>,
    %c2_121 = arith.constant 2 : index
    %c80_122 = arith.constant 80 : index
    %98 = vector.load %arg4[%c2_121, %c80_122] : memref<4x400xf32, #tpu.memory_space<vmem>>, vector<1x316xf32>
    %c24 = arith.constant 24 : index
    %c0_123 = arith.constant 0 : index
    %99 = vector.load %arg5[%c24, %c0_123] : memref<36x316xf32, #tpu.memory_space<vmem>>, vector<1x316xf32>
    tpu.vector_store %arg5[%c24, %c0_123], %98 {strides = array<i32>} : memref<36x316xf32, #tpu.memory_space<vmem>>, vector<1x316xf32>,
    %c2_124 = arith.constant 2 : index
    %c82_125 = arith.constant 82 : index
    %100 = vector.load %arg4[%c2_124, %c82_125] : memref<4x400xf32, #tpu.memory_space<vmem>>, vector<1x316xf32>
    %c25 = arith.constant 25 : index
    %c0_126 = arith.constant 0 : index
    %101 = vector.load %arg5[%c25, %c0_126] : memref<36x316xf32, #tpu.memory_space<vmem>>, vector<1x316xf32>
    tpu.vector_store %arg5[%c25, %c0_126], %100 {strides = array<i32>} : memref<36x316xf32, #tpu.memory_space<vmem>>, vector<1x316xf32>,
    %c2_127 = arith.constant 2 : index
    %c84_128 = arith.constant 84 : index
    %102 = vector.load %arg4[%c2_127, %c84_128] : memref<4x400xf32, #tpu.memory_space<vmem>>, vector<1x316xf32>
    %c26 = arith.constant 26 : index
    %c0_129 = arith.constant 0 : index
    %103 = vector.load %arg5[%c26, %c0_129] : memref<36x316xf32, #tpu.memory_space<vmem>>, vector<1x316xf32>
    tpu.vector_store %arg5[%c26, %c0_129], %102 {strides = array<i32>} : memref<36x316xf32, #tpu.memory_space<vmem>>, vector<1x316xf32>,
    %c3_130 = arith.constant 3 : index
    %c0_131 = arith.constant 0 : index
    %104 = vector.load %arg4[%c3_130, %c0_131] : memref<4x400xf32, #tpu.memory_space<vmem>>, vector<1x316xf32>
    %c27 = arith.constant 27 : index
    %c0_132 = arith.constant 0 : index
    %105 = vector.load %arg5[%c27, %c0_132] : memref<36x316xf32, #tpu.memory_space<vmem>>, vector<1x316xf32>
    tpu.vector_store %arg5[%c27, %c0_132], %104 {strides = array<i32>} : memref<36x316xf32, #tpu.memory_space<vmem>>, vector<1x316xf32>,
    %c3_133 = arith.constant 3 : index
    %c2_134 = arith.constant 2 : index
    %106 = vector.load %arg4[%c3_133, %c2_134] : memref<4x400xf32, #tpu.memory_space<vmem>>, vector<1x316xf32>
    %c28 = arith.constant 28 : index
    %c0_135 = arith.constant 0 : index
    %107 = vector.load %arg5[%c28, %c0_135] : memref<36x316xf32, #tpu.memory_space<vmem>>, vector<1x316xf32>
    tpu.vector_store %arg5[%c28, %c0_135], %106 {strides = array<i32>} : memref<36x316xf32, #tpu.memory_space<vmem>>, vector<1x316xf32>,
    %c3_136 = arith.constant 3 : index
    %c4_137 = arith.constant 4 : index
    %108 = vector.load %arg4[%c3_136, %c4_137] : memref<4x400xf32, #tpu.memory_space<vmem>>, vector<1x316xf32>
    %c29 = arith.constant 29 : index
    %c0_138 = arith.constant 0 : index
    %109 = vector.load %arg5[%c29, %c0_138] : memref<36x316xf32, #tpu.memory_space<vmem>>, vector<1x316xf32>
    tpu.vector_store %arg5[%c29, %c0_138], %108 {strides = array<i32>} : memref<36x316xf32, #tpu.memory_space<vmem>>, vector<1x316xf32>,
    %c3_139 = arith.constant 3 : index
    %c40_140 = arith.constant 40 : index
    %110 = vector.load %arg4[%c3_139, %c40_140] : memref<4x400xf32, #tpu.memory_space<vmem>>, vector<1x316xf32>
    %c30 = arith.constant 30 : index
    %c0_141 = arith.constant 0 : index
    %111 = vector.load %arg5[%c30, %c0_141] : memref<36x316xf32, #tpu.memory_space<vmem>>, vector<1x316xf32>
    tpu.vector_store %arg5[%c30, %c0_141], %110 {strides = array<i32>} : memref<36x316xf32, #tpu.memory_space<vmem>>, vector<1x316xf32>,
    %c3_142 = arith.constant 3 : index
    %c42_143 = arith.constant 42 : index
    %112 = vector.load %arg4[%c3_142, %c42_143] : memref<4x400xf32, #tpu.memory_space<vmem>>, vector<1x316xf32>
    %c31 = arith.constant 31 : index
    %c0_144 = arith.constant 0 : index
    %113 = vector.load %arg5[%c31, %c0_144] : memref<36x316xf32, #tpu.memory_space<vmem>>, vector<1x316xf32>
    tpu.vector_store %arg5[%c31, %c0_144], %112 {strides = array<i32>} : memref<36x316xf32, #tpu.memory_space<vmem>>, vector<1x316xf32>,
    %c3_145 = arith.constant 3 : index
    %c44_146 = arith.constant 44 : index
    %114 = vector.load %arg4[%c3_145, %c44_146] : memref<4x400xf32, #tpu.memory_space<vmem>>, vector<1x316xf32>
    %c32_147 = arith.constant 32 : index
    %c0_148 = arith.constant 0 : index
    %115 = vector.load %arg5[%c32_147, %c0_148] : memref<36x316xf32, #tpu.memory_space<vmem>>, vector<1x316xf32>
    tpu.vector_store %arg5[%c32_147, %c0_148], %114 {strides = array<i32>} : memref<36x316xf32, #tpu.memory_space<vmem>>, vector<1x316xf32>,
    %c3_149 = arith.constant 3 : index
    %c80_150 = arith.constant 80 : index
    %116 = vector.load %arg4[%c3_149, %c80_150] : memref<4x400xf32, #tpu.memory_space<vmem>>, vector<1x316xf32>
    %c33 = arith.constant 33 : index
    %c0_151 = arith.constant 0 : index
    %117 = vector.load %arg5[%c33, %c0_151] : memref<36x316xf32, #tpu.memory_space<vmem>>, vector<1x316xf32>
    tpu.vector_store %arg5[%c33, %c0_151], %116 {strides = array<i32>} : memref<36x316xf32, #tpu.memory_space<vmem>>, vector<1x316xf32>,
    %c3_152 = arith.constant 3 : index
    %c82_153 = arith.constant 82 : index
    %118 = vector.load %arg4[%c3_152, %c82_153] : memref<4x400xf32, #tpu.memory_space<vmem>>, vector<1x316xf32>
    %c34 = arith.constant 34 : index
    %c0_154 = arith.constant 0 : index
    %119 = vector.load %arg5[%c34, %c0_154] : memref<36x316xf32, #tpu.memory_space<vmem>>, vector<1x316xf32>
    tpu.vector_store %arg5[%c34, %c0_154], %118 {strides = array<i32>} : memref<36x316xf32, #tpu.memory_space<vmem>>, vector<1x316xf32>,
    %c3_155 = arith.constant 3 : index
    %c84_156 = arith.constant 84 : index
    %120 = vector.load %arg4[%c3_155, %c84_156] : memref<4x400xf32, #tpu.memory_space<vmem>>, vector<1x316xf32>
    %c35 = arith.constant 35 : index
    %c0_157 = arith.constant 0 : index
    %121 = vector.load %arg5[%c35, %c0_157] : memref<36x316xf32, #tpu.memory_space<vmem>>, vector<1x316xf32>
    tpu.vector_store %arg5[%c35, %c0_157], %120 {strides = array<i32>} : memref<36x316xf32, #tpu.memory_space<vmem>>, vector<1x316xf32>,
    %c0_158 = arith.constant 0 : index
    %c0_159 = arith.constant 0 : index
    %122 = vector.load %arg2[%c0_158, %c0_159] : memref<8x36xf32, #tpu.memory_space<vmem>>, vector<8x36xf32>
    %c0_160 = arith.constant 0 : index
    %c0_161 = arith.constant 0 : index
    %123 = vector.load %arg5[%c0_160, %c0_161] : memref<36x316xf32, #tpu.memory_space<vmem>>, vector<36x316xf32>
    %cst_162 = arith.constant dense<0.000000e+00> : vector<8x316xf32>
    %124 = tpu.matmul %122, %123, %cst_162 {dimension_numbers = #tpu.dot_dimension_numbers<[1], [0], [0], [1], [0, 0, 1, 1], [], []>} : vector<8x36xf32>, vector<36x316xf32>, vector<8x316xf32> -> vector<8x316xf32>
    %c0_163 = arith.constant 0 : index
    %c0_164 = arith.constant 0 : index
    %c0_165 = arith.constant 0 : index
    %125 = vector.load %arg3[%c0_163, %c0_164, %c0_165] : memref<1x8x320xf32, #tpu.memory_space<vmem>>, vector<1x8x316xf32>
    %126 = vector.shape_cast %125 : vector<1x8x316xf32> to vector<8x316xf32>
    %127 = vector.shape_cast %124 : vector<8x316xf32> to vector<1x8x316xf32>
    tpu.vector_store %arg3[%c0_163, %c0_164, %c0_165], %127 {strides = array<i32>} : memref<1x8x320xf32, #tpu.memory_space<vmem>>, vector<1x8x316xf32>,
    %cst_166 = arith.constant 0.000000e+00 : f32
    %128 = vector.broadcast %cst_166 : f32 to vector<8x4xf32>
    %c0_167 = arith.constant 0 : index
    %c0_168 = arith.constant 0 : index
    %c316 = arith.constant 316 : index
    %129 = vector.load %arg3[%c0_167, %c0_168, %c316] : memref<1x8x320xf32, #tpu.memory_space<vmem>>, vector<1x8x4xf32>
    %130 = vector.shape_cast %129 : vector<1x8x4xf32> to vector<8x4xf32>
    %131 = vector.shape_cast %128 : vector<8x4xf32> to vector<1x8x4xf32>
    tpu.vector_store %arg3[%c0_167, %c0_168, %c316], %131 {strides = array<i32>} : memref<1x8x320xf32, #tpu.memory_space<vmem>>, vector<1x8x4xf32>,
    return
  }
  func.func @transform_0(%arg0: i32) -> (i32, i32, i32) {
    %c0_i32 = arith.constant 0 : i32
    %c0_i32_0 = arith.constant 0 : i32
    %c0_i32_1 = arith.constant 0 : i32
    return %arg0, %c0_i32, %c0_i32_0 : i32, i32, i32
  }
  func.func @transform_1(%arg0: i32) -> (i32, i32) {
    %c0_i32 = arith.constant 0 : i32
    %c0_i32_0 = arith.constant 0 : i32
    %c0_i32_1 = arith.constant 0 : i32
    return %c0_i32, %c0_i32_0 : i32, i32
  }
  func.func @transform_2(%arg0: i32) -> (i32, i32, i32) {
    %c0_i32 = arith.constant 0 : i32
    %c0_i32_0 = arith.constant 0 : i32
    %c0_i32_1 = arith.constant 0 : i32
    return %arg0, %c0_i32, %c0_i32_0 : i32, i32, i32
  }
}

</mosaic_0001>

<llo_original>
// kernel: tpu_custom_call.1
$region0: #{tpu_custom_call.1}
  #allocation0 [shape = 'u32[]', space=smem, size = 0x4, offset = 0x4, fixed_abs, tag = 'smem constant byte address 0x4 - core index']
  #allocation1 [shape = 'u32[144,128]{1,0:T(1,128)}', space=vmem, size = 0x12000, scoped, tag = 'internal scratch']
  #allocation2 [shape = 'f32[4,400]{1,0:T(4,128)}', space=vmem, size = 0x2000, scoped, tag = 'scratch operand']
  #allocation3 [shape = 'f32[36,316]{1,0:T(8,128)}', space=vmem, size = 0xf000, scoped, tag = 'scratch operand']
  %s0 = inlined_call_operand.hbm [shape: f32[2,4,256], index: 0, kind: input, shape index: {}]
  %s1 = inlined_call_operand.hbm [shape: f32[8,36], index: 1, kind: input, shape index: {}]
  %s2 = inlined_call_operand.hbm [shape: f32[2,8,320], index: 2, kind: output, shape index: {}]
  %s3 = sld [smem:[#allocation0]]
  $region49: #{tpu_custom_call.1} parent=0
    _
  %s5 = ssub.s32 1, %s3
  %s6 = scalar_select 0, %s5, %s3
  $region1: #{tpu_custom_call.1} parent=0
    #allocation4 [shape = 'u8[8192]{0}', space=vmem, size = 0x2000, scoped, tag = 'input window, operand 0']
    #allocation5 [shape = 's32[2]{0}', space=sflag, size = 0x8, scoped, tag = 'scoped memory for tpu_custom_call.1']
    #allocation6 [shape = 's32[2]{0}', space=sflag, size = 0x8, scoped, tag = 'scoped memory for tpu_custom_call.1']
    #allocation7 [shape = 'u8[4096]{0}', space=vmem, size = 0x1000, scoped, tag = 'input window, operand 1, single buffered']
    #allocation8 [shape = 's32[1]{0}', space=sflag, size = 0x4, scoped, tag = 'scoped memory for tpu_custom_call.1']
    #allocation9 [shape = 'u8[24576]{0}', space=vmem, size = 0x6000, scoped, tag = 'output window, operand 0']
    %7 = vsyncpa [#allocation5], 0
    %s8 = scalar_lea.sflag [#allocation5], 1
    %9 = vsyncpa %s8, 0
    %10 = vsyncpa [#allocation8], 0
    %11 = vsyncpa [#allocation6], 0
    %s12 = scalar_lea.sflag [#allocation6], 1
    %13 = vsyncpa %s12, 0
    loop: start=0, step=1, limit=4
    $region2: #{tpu_custom_call.1} parent=1 // loop_pre_header
      _
    $region3: #{tpu_custom_call.1} parent=1 // loop_header
      %s15 = sphi 0, %s19
      %p16 = scmp.ge.s32.totalorder %s15, 4
      %s25 = sphi 0, %s27
      %s28 = sphi 0, %s25
      %s29 = sphi 0, %s28
      %s45 = sphi 0, %s29
      %s49 = sphi 0, %s49
      %s51 = sphi 0, %s49
      %s52 = sphi 0, %s51
      %s66 = sphi 0, %s52
      %s72 = sphi 0, %s74
      %s75 = sphi 0, %s72
      %s76 = sphi 0, %s75
      %s92 = sphi 0, %s76
    $region4: #{tpu_custom_call.1} parent=1 // loop_header_branch
      %18 = sbr.rel (%p16) target = $region8
    $region5: #{tpu_custom_call.1} parent=1 // loop_body
      %s20 = ssub.s32 %s15, 1
      %s21 = ssub.s32 %s15, 2
      %s22 = sadd.s32 %s15, 1
      %s23 = ssub.s32 %s15, %s22
      %p24 = scmp.eq.s32.totalorder %s23, 0
      %s26 = sadd.s32 %s25, 1
      %s27 = scalar_select %p24, %s25, %s26
      %p30 = pneg %p24
      %p31 = scmp.eq.s32.totalorder %s15, 1
      %p32 = por %p30, %p31
      %p33 = scmp.ne.s32.totalorder %s25, %s28
      %p34 = scmp.eq.s32.totalorder %s15, 0
      %p35 = por %p33, %p34
      %p36 = scmp.ne.s32.totalorder %s25, %s28
      %p37 = scmp.eq.s32.totalorder %s20, 1
      %p38 = por %p36, %p37
      %p39 = scmp.ne.s32.totalorder %s28, %s29
      %p40 = scmp.eq.s32.totalorder %s20, 0
      %p41 = por %p39, %p40
      %p42 = scmp.ne.s32.totalorder %s28, %s29
      %p43 = scmp.eq.s32.totalorder %s21, 1
      %p44 = por %p42, %p43
      %p46 = scmp.ne.s32.totalorder %s29, %s45
      %p47 = scmp.eq.s32.totalorder %s21, 0
      %p48 = por %p46, %p47
      %s50 = sadd.s32 %s49, 1
      %p53 = scmp.eq.s32.totalorder %s15, 1
      %p54 = scmp.ne.s32.totalorder %s49, %s51
      %p55 = scmp.eq.s32.totalorder %s15, 0
      %p56 = por %p54, %p55
      %p57 = scmp.ne.s32.totalorder %s49, %s51
      %p58 = scmp.eq.s32.totalorder %s20, 1
      %p59 = por %p57, %p58
      %p60 = scmp.ne.s32.totalorder %s51, %s52
      %p61 = scmp.eq.s32.totalorder %s20, 0
      %p62 = por %p60, %p61
      %p63 = scmp.ne.s32.totalorder %s51, %s52
      %p64 = scmp.eq.s32.totalorder %s21, 1
      %p65 = por %p63, %p64
      %p67 = scmp.ne.s32.totalorder %s52, %s66
      %p68 = scmp.eq.s32.totalorder %s21, 0
      %p69 = por %p67, %p68
      %s70 = ssub.s32 %s15, %s22
      %p71 = scmp.eq.s32.totalorder %s70, 0
      %s73 = sadd.s32 %s72, 1
      %s74 = scalar_select %p71, %s72, %s73
      %p77 = pneg %p71
      %p78 = scmp.eq.s32.totalorder %s15, 1
      %p79 = por %p77, %p78
      %p80 = scmp.ne.s32.totalorder %s72, %s75
      %p81 = scmp.eq.s32.totalorder %s15, 0
      %p82 = por %p80, %p81
      %p83 = scmp.ne.s32.totalorder %s72, %s75
      %p84 = scmp.eq.s32.totalorder %s20, 1
      %p85 = por %p83, %p84
      %p86 = scmp.ne.s32.totalorder %s75, %s76
      %p87 = scmp.eq.s32.totalorder %s20, 0
      %p88 = por %p86, %p87
      %p89 = scmp.ne.s32.totalorder %s75, %s76
      %p90 = scmp.eq.s32.totalorder %s21, 1
      %p91 = por %p89, %p90
      %p93 = scmp.ne.s32.totalorder %s76, %s92
      %p94 = scmp.eq.s32.totalorder %s21, 0
      %p95 = por %p93, %p94
      %p96 = scmp.le.s32.totalorder 1, %s15
      %p97 = scmp.lt.s32.totalorder %s15, 3
      %p98 = pnand %p96, %p97
      %p99 = pneg %p98
      // Predicated region
      $region9: #{tpu_custom_call.1} parent=5 // pred_check
        _
      $region10: #{tpu_custom_call.1} parent=5 // pred_check_branch
        %101 = sbr.rel (%p98) target = $region12
      $region11: #{tpu_custom_call.1} parent=5 // pred_region
        %s102 = ssub.s32 %s15, 1
        // Predicated region
        $region13: #{tpu_custom_call.1} parent=11 // pred_check
          %p103 = pneg %p62
        $region14: #{tpu_custom_call.1} parent=11 // pred_check_branch
          %105 = sbr.rel (%p103) target = $region16
        $region15: #{tpu_custom_call.1} parent=11 // pred_region
          %s107 = ssub.s32 128, 128
          %108 = vsyncadd [#allocation8], %s107
          %s110 = sshll.u32 [#allocation7], 4
          %s111 = int_to_ptr.vmem [resolvable:$true] %s110
          %113 = dma.hbm_to_vmem [thread:$0]  %s1, 128, %s111, [#allocation8]
        $region16: #{tpu_custom_call.1} parent=11 // pred_fallthru
          _
      $region12: #{tpu_custom_call.1} parent=5 // pred_fallthru
        _
      %p114 = scmp.lt.s32.totalorder %s15, 2
      // Predicated region
      $region17: #{tpu_custom_call.1} parent=5 // pred_check
        %p115 = pneg %p114
      $region18: #{tpu_custom_call.1} parent=5 // pred_check_branch
        %117 = sbr.rel (%p115) target = $region20
      $region19: #{tpu_custom_call.1} parent=5 // pred_region
        // Predicated region
        $region21: #{tpu_custom_call.1} parent=19 // pred_check
          %p118 = pneg %p35
        $region22: #{tpu_custom_call.1} parent=19 // pred_check_branch
          %120 = sbr.rel (%p118) target = $region24
        $region23: #{tpu_custom_call.1} parent=19 // pred_region
          %s121 = sand.u32 %s25, 1
          %s122 = scalar_lea.sflag [#allocation5], %s121
          %s123 = sand.u32 %s25, 1
          %s124 = smul.addr %s123, 8
          %s125 = scalar_lea.vmem [#allocation4], %s124
          %s127 = ssub.s32 128, 128
          %128 = vsyncadd %s122, %s127
          %s129 = smul.addr %s15, 2
          %s130 = smul.addr %s129, 64
          %s131 = scalar_lea.hbm %s0, %s130
          %s133 = sshll.u32 %s125, 4
          %s134 = int_to_ptr.vmem [resolvable:$true] %s133
          %136 = dma.hbm_to_vmem [thread:$0]  %s131, 128, %s134, %s122
        $region24: #{tpu_custom_call.1} parent=19 // pred_fallthru
          _
      $region20: #{tpu_custom_call.1} parent=5 // pred_fallthru
        _
      %p137 = scmp.le.s32.totalorder 1, %s15
      %p138 = scmp.lt.s32.totalorder %s15, 3
      %p139 = pnand %p137, %p138
      %p140 = pneg %p139
      // Predicated region
      $region25: #{tpu_custom_call.1} parent=5 // pred_check
        _
      $region26: #{tpu_custom_call.1} parent=5 // pred_check_branch
        %142 = sbr.rel (%p139) target = $region28
      $region27: #{tpu_custom_call.1} parent=5 // pred_region
        %s143 = ssub.s32 %s15, 1
        %s144 = sand.u32 %s28, 1
        %s145 = scalar_lea.sflag [#allocation5], %s144
        %s146 = sand.u32 %s28, 1
        %s147 = smul.addr %s146, 8
        %s148 = scalar_lea.vmem [#allocation4], %s147
        // Predicated region
        $region29: #{tpu_custom_call.1} parent=27 // pred_check
          %p149 = pneg %p41
        $region30: #{tpu_custom_call.1} parent=27 // pred_check_branch
          %151 = sbr.rel (%p149) target = $region32
        $region31: #{tpu_custom_call.1} parent=27 // pred_region
          %152 = dma.done %s145, 128
        $region32: #{tpu_custom_call.1} parent=27 // pred_fallthru
          _
        // Predicated region
        $region33: #{tpu_custom_call.1} parent=27 // pred_check
          %p153 = pneg %p62
        $region34: #{tpu_custom_call.1} parent=27 // pred_check_branch
          %155 = sbr.rel (%p153) target = $region36
        $region35: #{tpu_custom_call.1} parent=27 // pred_region
          %156 = dma.done [#allocation8], 128
        $region36: #{tpu_custom_call.1} parent=27 // pred_fallthru
          _
        %s157 = sand.u32 %s28, 1
        %s158 = scalar_lea.sflag [#allocation5], %s157
        %s159 = sand.u32 %s28, 1
        %s160 = smul.addr %s159, 8
        %s161 = scalar_lea.vmem [#allocation4], %s160
        %p162 = pneg %p41
        %p163 = pneg %p38
        %p164 = pneg %p62
        %p165 = pneg %p59
        %p166 = pneg %p88
        %p167 = pneg %p85
        %s168 = sand.u32 %s75, 1
        %s169 = scalar_lea.sflag [#allocation6], %s168
        %s170 = sand.u32 %s75, 1
        %s171 = smul.addr %s170, 24
        %s172 = scalar_lea.vmem [#allocation9], %s171
        %173 = vst [vmem:[#allocation2] sm:$0xff] 0.0
        %vm174 = vcmask 1043456
        %vm175 = vcmask 130052
        %vm176 = vmor %vm175, %vm174
        %177 = vst.msk [vmem:[#allocation2 + $0x8] sm:$0xff] %vm176, 0.0
        %v178 = vld [vmem:[%s148] sm:$0xf]
        %180 = vrot.lane.b32.xlu0 %v178, 42
        %v181 = vpop.permute.xlu0 %180
        %vm183 = vcmask 470352
        %184 = vst.msk [vmem:[#allocation2] sm:$0xf] %vm183, %v181
        %v185 = vld [vmem:[%s148] sm:$0xf]
        %187 = vrot.lane.b32.xlu0 %v185, 46
        %v188 = vpop.permute.xlu0 %187
        %vm190 = vcmask 634352
        %191 = vst.msk [vmem:[#allocation2] sm:$0xf] %vm190, %v188
        %v192 = vld [vmem:[%s148] sm:$0xf]
        %194 = vrot.lane.b32.xlu0 %v192, 50
        %v195 = vpop.permute.xlu0 %194
        %vm197 = vcmask 798352
        %198 = vst.msk [vmem:[#allocation2] sm:$0xf] %vm197, %v195
        %v199 = vld [vmem:[%s148] sm:$0xf]
        %201 = vrot.lane.b32.xlu0 %v199, 54
        %v202 = vpop.permute.xlu0 %201
        %vm204 = vcmask 962352
        %205 = vst.msk [vmem:[#allocation2] sm:$0xf] %vm204, %v202
        %v206 = vld [vmem:[%s148] sm:$0xf]
        %208 = vrot.lane.b32.xlu0 %v206, 58
        %v209 = vpop.permute.xlu0 %208
        %v210 = vrot.slane %v209, 4
        %vm211 = vcmask 474112
        %v212 = vsel %vm211, %v210, %v209
        %vm214 = vcmask 1044432
        %vm215 = vcmask 80900
        %vm216 = vmor %vm215, %vm214
        %217 = vst.msk [vmem:[#allocation2] sm:$0xff] %vm216, %v212
        %v218 = vld [vmem:[%s148] sm:$0xf]
        %220 = vrot.lane.b32.xlu0 %v218, 62
        %v221 = vpop.permute.xlu0 %220
        %vm223 = vcmask 240752
        %224 = vst.msk [vmem:[#allocation2 + $0x4] sm:$0xf] %vm223, %v221
        %v225 = vld [vmem:[%s148] sm:$0xf]
        %227 = vrot.lane.b32.xlu0 %v225, 66
        %v228 = vpop.permute.xlu0 %227
        %vm230 = vcmask 404752
        %231 = vst.msk [vmem:[#allocation2 + $0x4] sm:$0xf] %vm230, %v228
        %v232 = vld [vmem:[%s148] sm:$0xf]
        %234 = vrot.lane.b32.xlu0 %v232, 70
        %v235 = vpop.permute.xlu0 %234
        %vm237 = vcmask 568752
        %238 = vst.msk [vmem:[#allocation2 + $0x4] sm:$0xf] %vm237, %v235
        %v239 = vld [vmem:[%s148 + $0x4] sm:$0xf]
        %241 = vrot.lane.b32.xlu0 %v239, 74
        %v242 = vpop.permute.xlu0 %241
        %vm244 = vcmask 732752
        %245 = vst.msk [vmem:[#allocation2 + $0x4] sm:$0xf] %vm244, %v242
        %v246 = vld [vmem:[%s148 + $0x4] sm:$0xf]
        %248 = vrot.lane.b32.xlu0 %v246, 78
        %v249 = vpop.permute.xlu0 %248
        %vm251 = vcmask 896752
        %252 = vst.msk [vmem:[#allocation2 + $0x4] sm:$0xf] %vm251, %v249
        %v253 = vld [vmem:[%s148 + $0x4] sm:$0xf]
        %255 = vrot.lane.b32.xlu0 %v253, 82
        %v256 = vpop.permute.xlu0 %255
        %v257 = vrot.slane %v256, 4
        %vm258 = vcmask 670720
        %v259 = vsel %vm258, %v257, %v256
        %vm261 = vcmask 1044368
        %vm262 = vcmask 15364
        %vm263 = vmor %vm262, %vm261
        %264 = vst.msk [vmem:[#allocation2 + $0x4] sm:$0xff] %vm263, %v259
        %v265 = vld [vmem:[%s148 + $0x4] sm:$0xf]
        %267 = vrot.lane.b32.xlu0 %v265, 86
        %v268 = vpop.permute.xlu0 %267
        %vm270 = vcmask 175152
        %271 = vst.msk [vmem:[#allocation2 + $0x8] sm:$0xf] %vm270, %v268
        %v272 = vld [vmem:[%s148 + $0x4] sm:$0xf]
        %274 = vrot.lane.b32.xlu0 %v272, 90
        %v275 = vpop.permute.xlu0 %274
        %vm277 = vcmask 339152
        %278 = vst.msk [vmem:[#allocation2 + $0x8] sm:$0xf] %vm277, %v275
        %v279 = vld [vmem:[%s148 + $0x4] sm:$0xf]
        %281 = vrot.lane.b32.xlu0 %v279, 94
        %v282 = vpop.permute.xlu0 %281
        %vm284 = vcmask 503152
        %285 = vst.msk [vmem:[#allocation2 + $0x8] sm:$0xf] %vm284, %v282
        %v286 = vld [vmem:[%s148 + $0x4] sm:$0xf]
        %288 = vrot.lane.b32.xlu0 %v286, 98
        %v289 = vpop.permute.xlu0 %288
        %vm291 = vcmask 667152
        %292 = vst.msk [vmem:[#allocation2 + $0x8] sm:$0xf] %vm291, %v289
        %v293 = vld [vmem:[%s148 + $0x4] sm:$0xf]
        %295 = vrot.lane.b32.xlu0 %v293, 102
        %v296 = vpop.permute.xlu0 %295
        %vm298 = vcmask 831152
        %299 = vst.msk [vmem:[#allocation2 + $0x8] sm:$0xf] %vm298, %v296
        %v300 = vld [vmem:[#allocation2] ss:$4 sm:$0x7]
        %v301 = vlaneseq
        %vm302 = vcmp.ge.s32.totalorder %v301, 0
        %vm303 = vcmp.lt.s32.totalorder %v301, 316
        %vm304 = vmand %vm302, %vm303
        %305 = vst.msk [vmem:[#allocation3] ss:$8 sm:$0x7] %vm304, %v300
        %306 = vst.msk [vmem:[#allocation3] ss:$8 sm:$0x0] %vm304, %v300
        %v307 = vld [vmem:[#allocation2] ss:$4 sm:$0x7]
        %309 = vrot.lane.b32.xlu0 %v307, 126
        %v310 = vpop.permute.xlu0 %309
        %v311 = vrot.slane %v310, 1
        %vm312 = vcmask 1031168
        %v313 = vsel %vm312, %v310, %v311
        %s315 = scalar_lea.vmem [#allocation3], 1
        %316 = vst.msk [vmem:[%s315] ss:$8 sm:$0x7] %vm304, %v313
        %317 = vst.msk [vmem:[%s315] ss:$8 sm:$0x0] %vm304, %v313
        %v318 = vld [vmem:[#allocation2] ss:$4 sm:$0x7]
        %320 = vrot.lane.b32.xlu0 %v318, 124
        %v321 = vpop.permute.xlu0 %320
        %v322 = vrot.slane %v321, 1
        %vm323 = vcmask 1014784
        %v324 = vsel %vm323, %v321, %v322
        %s326 = scalar_lea.vmem [#allocation3], 2
        %327 = vst.msk [vmem:[%s326] ss:$8 sm:$0x7] %vm304, %v324
        %328 = vst.msk [vmem:[%s326] ss:$8 sm:$0x0] %vm304, %v324
        %v329 = vld [vmem:[#allocation2] ss:$4 sm:$0x7]
        %331 = vrot.lane.b32.xlu0 %v329, 88
        %v332 = vpop.permute.xlu0 %331
        %v333 = vrot.slane %v332, 1
        %vm334 = vcmask 719872
        %v335 = vsel %vm334, %v332, %v333
        %s337 = scalar_lea.vmem [#allocation3], 3
        %338 = vst.msk [vmem:[%s337] ss:$8 sm:$0x7] %vm304, %v335
        %339 = vst.msk [vmem:[%s337] ss:$8 sm:$0x0] %vm304, %v335
        %v340 = vld [vmem:[#allocation2] ss:$4 sm:$0x7]
        %342 = vrot.lane.b32.xlu0 %v340, 86
        %v343 = vpop.permute.xlu0 %342
        %v344 = vrot.slane %v343, 1
        %vm345 = vcmask 703488
        %v346 = vsel %vm345, %v343, %v344
        %s348 = scalar_lea.vmem [#allocation3], 4
        %349 = vst.msk [vmem:[%s348] ss:$8 sm:$0x7] %vm304, %v346
        %350 = vst.msk [vmem:[%s348] ss:$8 sm:$0x0] %vm304, %v346
        %v351 = vld [vmem:[#allocation2] ss:$4 sm:$0x7]
        %353 = vrot.lane.b32.xlu0 %v351, 84
        %v354 = vpop.permute.xlu0 %353
        %v355 = vrot.slane %v354, 1
        %vm356 = vcmask 687104
        %v357 = vsel %vm356, %v354, %v355
        %s359 = scalar_lea.vmem [#allocation3], 5
        %360 = vst.msk [vmem:[%s359] ss:$8 sm:$0x7] %vm304, %v357
        %361 = vst.msk [vmem:[%s359] ss:$8 sm:$0x0] %vm304, %v357
        %v362 = vld [vmem:[#allocation2] ss:$4 sm:$0xf]
        %364 = vrot.lane.b32.xlu0 %v362, 48
        %v365 = vpop.permute.xlu0 %364
        %v366 = vrot.slane %v365, 1
        %vm367 = vcmask 392192
        %v368 = vsel %vm367, %v365, %v366
        %s370 = scalar_lea.vmem [#allocation3], 6
        %371 = vst.msk [vmem:[%s370] ss:$8 sm:$0x7] %vm304, %v368
        %372 = vst.msk [vmem:[%s370] ss:$8 sm:$0x0] %vm304, %v368
        %v373 = vld [vmem:[#allocation2] ss:$4 sm:$0xf]
        %375 = vrot.lane.b32.xlu0 %v373, 46
        %v376 = vpop.permute.xlu0 %375
        %v377 = vrot.slane %v376, 1
        %vm378 = vcmask 375808
        %v379 = vsel %vm378, %v376, %v377
        %s381 = scalar_lea.vmem [#allocation3], 7
        %382 = vst.msk [vmem:[%s381] ss:$8 sm:$0x7] %vm304, %v379
        %383 = vst.msk [vmem:[%s381] ss:$8 sm:$0x0] %vm304, %v379
        %v384 = vld [vmem:[#allocation2] ss:$4 sm:$0xf]
        %386 = vrot.lane.b32.xlu0 %v384, 44
        %v387 = vpop.permute.xlu0 %386
        %v388 = vrot.slane %v387, 1
        %vm389 = vcmask 359424
        %v390 = vsel %vm389, %v387, %v388
        %s392 = scalar_lea.vmem [#allocation3], 24
        %393 = vst.msk [vmem:[%s392] ss:$8 sm:$0x7] %vm304, %v390
        %394 = vst.msk [vmem:[%s392] ss:$8 sm:$0x0] %vm304, %v390
        %s395 = scalar_lea.vmem [#allocation2], 1
        %v396 = vld [vmem:[%s395] ss:$4 sm:$0x7]
        %s397 = scalar_lea.vmem [#allocation3], 25
        %398 = vst.msk [vmem:[%s397] ss:$8 sm:$0x7] %vm304, %v396
        %399 = vst.msk [vmem:[%s397] ss:$8 sm:$0x0] %vm304, %v396
        %v400 = vld [vmem:[%s395] ss:$4 sm:$0x7]
        %402 = vrot.lane.b32.xlu0 %v400, 126
        %v403 = vpop.permute.xlu0 %402
        %v404 = vrot.slane %v403, 1
        %v405 = vsel %vm312, %v403, %v404
        %s407 = scalar_lea.vmem [#allocation3], 26
        %408 = vst.msk [vmem:[%s407] ss:$8 sm:$0x7] %vm304, %v405
        %409 = vst.msk [vmem:[%s407] ss:$8 sm:$0x0] %vm304, %v405
        %v410 = vld [vmem:[%s395] ss:$4 sm:$0x7]
        %412 = vrot.lane.b32.xlu0 %v410, 124
        %v413 = vpop.permute.xlu0 %412
        %v414 = vrot.slane %v413, 1
        %v415 = vsel %vm323, %v413, %v414
        %s417 = scalar_lea.vmem [#allocation3], 27
        %418 = vst.msk [vmem:[%s417] ss:$8 sm:$0x7] %vm304, %v415
        %419 = vst.msk [vmem:[%s417] ss:$8 sm:$0x0] %vm304, %v415
        %v420 = vld [vmem:[%s395] ss:$4 sm:$0x7]
        %422 = vrot.lane.b32.xlu0 %v420, 88
        %v423 = vpop.permute.xlu0 %422
        %v424 = vrot.slane %v423, 1
        %v425 = vsel %vm334, %v423, %v424
        %s427 = scalar_lea.vmem [#allocation3], 28
        %428 = vst.msk [vmem:[%s427] ss:$8 sm:$0x7] %vm304, %v425
        %429 = vst.msk [vmem:[%s427] ss:$8 sm:$0x0] %vm304, %v425
        %v430 = vld [vmem:[%s395] ss:$4 sm:$0x7]
        %432 = vrot.lane.b32.xlu0 %v430, 86
        %v433 = vpop.permute.xlu0 %432
        %v434 = vrot.slane %v433, 1
        %v435 = vsel %vm345, %v433, %v434
        %s437 = scalar_lea.vmem [#allocation3], 29
        %438 = vst.msk [vmem:[%s437] ss:$8 sm:$0x7] %vm304, %v435
        %439 = vst.msk [vmem:[%s437] ss:$8 sm:$0x0] %vm304, %v435
        %v440 = vld [vmem:[%s395] ss:$4 sm:$0x7]
        %442 = vrot.lane.b32.xlu0 %v440, 84
        %v443 = vpop.permute.xlu0 %442
        %v444 = vrot.slane %v443, 1
        %v445 = vsel %vm356, %v443, %v444
        %s447 = scalar_lea.vmem [#allocation3], 30
        %448 = vst.msk [vmem:[%s447] ss:$8 sm:$0x7] %vm304, %v445
        %449 = vst.msk [vmem:[%s447] ss:$8 sm:$0x0] %vm304, %v445
        %v450 = vld [vmem:[%s395] ss:$4 sm:$0xf]
        %452 = vrot.lane.b32.xlu0 %v450, 48
        %v453 = vpop.permute.xlu0 %452
        %v454 = vrot.slane %v453, 1
        %v455 = vsel %vm367, %v453, %v454
        %s457 = scalar_lea.vmem [#allocation3], 31
        %458 = vst.msk [vmem:[%s457] ss:$8 sm:$0x7] %vm304, %v455
        %459 = vst.msk [vmem:[%s457] ss:$8 sm:$0x0] %vm304, %v455
        %v460 = vld [vmem:[%s395] ss:$4 sm:$0xf]
        %462 = vrot.lane.b32.xlu0 %v460, 46
        %v463 = vpop.permute.xlu0 %462
        %v464 = vrot.slane %v463, 1
        %v465 = vsel %vm378, %v463, %v464
        %s467 = scalar_lea.vmem [#allocation3], 48
        %468 = vst.msk [vmem:[%s467] ss:$8 sm:$0x7] %vm304, %v465
        %469 = vst.msk [vmem:[%s467] ss:$8 sm:$0x0] %vm304, %v465
        %v470 = vld [vmem:[%s395] ss:$4 sm:$0xf]
        %472 = vrot.lane.b32.xlu0 %v470, 44
        %v473 = vpop.permute.xlu0 %472
        %v474 = vrot.slane %v473, 1
        %v475 = vsel %vm389, %v473, %v474
        %s477 = scalar_lea.vmem [#allocation3], 49
        %478 = vst.msk [vmem:[%s477] ss:$8 sm:$0x7] %vm304, %v475
        %479 = vst.msk [vmem:[%s477] ss:$8 sm:$0x0] %vm304, %v475
        %s480 = scalar_lea.vmem [#allocation2], 2
        %v481 = vld [vmem:[%s480] ss:$4 sm:$0x7]
        %s482 = scalar_lea.vmem [#allocation3], 50
        %483 = vst.msk [vmem:[%s482] ss:$8 sm:$0x7] %vm304, %v481
        %484 = vst.msk [vmem:[%s482] ss:$8 sm:$0x0] %vm304, %v481
        %v485 = vld [vmem:[%s480] ss:$4 sm:$0x7]
        %487 = vrot.lane.b32.xlu0 %v485, 126
        %v488 = vpop.permute.xlu0 %487
        %v489 = vrot.slane %v488, 1
        %v490 = vsel %vm312, %v488, %v489
        %s492 = scalar_lea.vmem [#allocation3], 51
        %493 = vst.msk [vmem:[%s492] ss:$8 sm:$0x7] %vm304, %v490
        %494 = vst.msk [vmem:[%s492] ss:$8 sm:$0x0] %vm304, %v490
        %v495 = vld [vmem:[%s480] ss:$4 sm:$0x7]
        %497 = vrot.lane.b32.xlu0 %v495, 124
        %v498 = vpop.permute.xlu0 %497
        %v499 = vrot.slane %v498, 1
        %v500 = vsel %vm323, %v498, %v499
        %s502 = scalar_lea.vmem [#allocation3], 52
        %503 = vst.msk [vmem:[%s502] ss:$8 sm:$0x7] %vm304, %v500
        %504 = vst.msk [vmem:[%s502] ss:$8 sm:$0x0] %vm304, %v500
        %v505 = vld [vmem:[%s480] ss:$4 sm:$0x7]
        %507 = vrot.lane.b32.xlu0 %v505, 88
        %v508 = vpop.permute.xlu0 %507
        %v509 = vrot.slane %v508, 1
        %v510 = vsel %vm334, %v508, %v509
        %s512 = scalar_lea.vmem [#allocation3], 53
        %513 = vst.msk [vmem:[%s512] ss:$8 sm:$0x7] %vm304, %v510
        %514 = vst.msk [vmem:[%s512] ss:$8 sm:$0x0] %vm304, %v510
        %v515 = vld [vmem:[%s480] ss:$4 sm:$0x7]
        %517 = vrot.lane.b32.xlu0 %v515, 86
        %v518 = vpop.permute.xlu0 %517
        %v519 = vrot.slane %v518, 1
        %v520 = vsel %vm345, %v518, %v519
        %s522 = scalar_lea.vmem [#allocation3], 54
        %523 = vst.msk [vmem:[%s522] ss:$8 sm:$0x7] %vm304, %v520
        %524 = vst.msk [vmem:[%s522] ss:$8 sm:$0x0] %vm304, %v520
        %v525 = vld [vmem:[%s480] ss:$4 sm:$0x7]
        %527 = vrot.lane.b32.xlu0 %v525, 84
        %v528 = vpop.permute.xlu0 %527
        %v529 = vrot.slane %v528, 1
        %v530 = vsel %vm356, %v528, %v529
        %s532 = scalar_lea.vmem [#allocation3], 55
        %533 = vst.msk [vmem:[%s532] ss:$8 sm:$0x7] %vm304, %v530
        %534 = vst.msk [vmem:[%s532] ss:$8 sm:$0x0] %vm304, %v530
        %v535 = vld [vmem:[%s480] ss:$4 sm:$0xf]
        %537 = vrot.lane.b32.xlu0 %v535, 48
        %v538 = vpop.permute.xlu0 %537
        %v539 = vrot.slane %v538, 1
        %v540 = vsel %vm367, %v538, %v539
        %s542 = scalar_lea.vmem [#allocation3], 72
        %543 = vst.msk [vmem:[%s542] ss:$8 sm:$0x7] %vm304, %v540
        %544 = vst.msk [vmem:[%s542] ss:$8 sm:$0x0] %vm304, %v540
        %v545 = vld [vmem:[%s480] ss:$4 sm:$0xf]
        %547 = vrot.lane.b32.xlu0 %v545, 46
        %v548 = vpop.permute.xlu0 %547
        %v549 = vrot.slane %v548, 1
        %v550 = vsel %vm378, %v548, %v549
        %s552 = scalar_lea.vmem [#allocation3], 73
        %553 = vst.msk [vmem:[%s552] ss:$8 sm:$0x7] %vm304, %v550
        %554 = vst.msk [vmem:[%s552] ss:$8 sm:$0x0] %vm304, %v550
        %v555 = vld [vmem:[%s480] ss:$4 sm:$0xf]
        %557 = vrot.lane.b32.xlu0 %v555, 44
        %v558 = vpop.permute.xlu0 %557
        %v559 = vrot.slane %v558, 1
        %v560 = vsel %vm389, %v558, %v559
        %s562 = scalar_lea.vmem [#allocation3], 74
        %563 = vst.msk [vmem:[%s562] ss:$8 sm:$0x7] %vm304, %v560
        %564 = vst.msk [vmem:[%s562] ss:$8 sm:$0x0] %vm304, %v560
        %s565 = scalar_lea.vmem [#allocation2], 3
        %v566 = vld [vmem:[%s565] ss:$4 sm:$0x7]
        %s567 = scalar_lea.vmem [#allocation3], 75
        %568 = vst.msk [vmem:[%s567] ss:$8 sm:$0x7] %vm304, %v566
        %569 = vst.msk [vmem:[%s567] ss:$8 sm:$0x0] %vm304, %v566
        %v570 = vld [vmem:[%s565] ss:$4 sm:$0x7]
        %572 = vrot.lane.b32.xlu0 %v570, 126
        %v573 = vpop.permute.xlu0 %572
        %v574 = vrot.slane %v573, 1
        %v575 = vsel %vm312, %v573, %v574
        %s577 = scalar_lea.vmem [#allocation3], 76
        %578 = vst.msk [vmem:[%s577] ss:$8 sm:$0x7] %vm304, %v575
        %579 = vst.msk [vmem:[%s577] ss:$8 sm:$0x0] %vm304, %v575
        %v580 = vld [vmem:[%s565] ss:$4 sm:$0x7]
        %582 = vrot.lane.b32.xlu0 %v580, 124
        %v583 = vpop.permute.xlu0 %582
        %v584 = vrot.slane %v583, 1
        %v585 = vsel %vm323, %v583, %v584
        %s587 = scalar_lea.vmem [#allocation3], 77
        %588 = vst.msk [vmem:[%s587] ss:$8 sm:$0x7] %vm304, %v585
        %589 = vst.msk [vmem:[%s587] ss:$8 sm:$0x0] %vm304, %v585
        %v590 = vld [vmem:[%s565] ss:$4 sm:$0x7]
        %592 = vrot.lane.b32.xlu0 %v590, 88
        %v593 = vpop.permute.xlu0 %592
        %v594 = vrot.slane %v593, 1
        %v595 = vsel %vm334, %v593, %v594
        %s597 = scalar_lea.vmem [#allocation3], 78
        %598 = vst.msk [vmem:[%s597] ss:$8 sm:$0x7] %vm304, %v595
        %599 = vst.msk [vmem:[%s597] ss:$8 sm:$0x0] %vm304, %v595
        %v600 = vld [vmem:[%s565] ss:$4 sm:$0x7]
        %602 = vrot.lane.b32.xlu0 %v600, 86
        %v603 = vpop.permute.xlu0 %602
        %v604 = vrot.slane %v603, 1
        %v605 = vsel %vm345, %v603, %v604
        %s607 = scalar_lea.vmem [#allocation3], 79
        %608 = vst.msk [vmem:[%s607] ss:$8 sm:$0x7] %vm304, %v605
        %609 = vst.msk [vmem:[%s607] ss:$8 sm:$0x0] %vm304, %v605
        %v610 = vld [vmem:[%s565] ss:$4 sm:$0x7]
        %612 = vrot.lane.b32.xlu0 %v610, 84
        %v613 = vpop.permute.xlu0 %612
        %v614 = vrot.slane %v613, 1
        %v615 = vsel %vm356, %v613, %v614
        %s617 = scalar_lea.vmem [#allocation3], 96
        %618 = vst.msk [vmem:[%s617] ss:$8 sm:$0x7] %vm304, %v615
        %619 = vst.msk [vmem:[%s617] ss:$8 sm:$0x0] %vm304, %v615
        %v620 = vld [vmem:[%s565] ss:$4 sm:$0xf]
        %622 = vrot.lane.b32.xlu0 %v620, 48
        %v623 = vpop.permute.xlu0 %622
        %v624 = vrot.slane %v623, 1
        %v625 = vsel %vm367, %v623, %v624
        %s627 = scalar_lea.vmem [#allocation3], 97
        %628 = vst.msk [vmem:[%s627] ss:$8 sm:$0x7] %vm304, %v625
        %629 = vst.msk [vmem:[%s627] ss:$8 sm:$0x0] %vm304, %v625
        %v630 = vld [vmem:[%s565] ss:$4 sm:$0xf]
        %632 = vrot.lane.b32.xlu0 %v630, 46
        %v633 = vpop.permute.xlu0 %632
        %v634 = vrot.slane %v633, 1
        %v635 = vsel %vm378, %v633, %v634
        %s637 = scalar_lea.vmem [#allocation3], 98
        %638 = vst.msk [vmem:[%s637] ss:$8 sm:$0x7] %vm304, %v635
        %639 = vst.msk [vmem:[%s637] ss:$8 sm:$0x0] %vm304, %v635
        %v640 = vld [vmem:[%s565] ss:$4 sm:$0xf]
        %642 = vrot.lane.b32.xlu0 %v640, 44
        %v643 = vpop.permute.xlu0 %642
        %v644 = vrot.slane %v643, 1
        %v645 = vsel %vm389, %v643, %v644
        %s647 = scalar_lea.vmem [#allocation3], 99
        %648 = vst.msk [vmem:[%s647] ss:$8 sm:$0x7] %vm304, %v645
        %649 = vst.msk [vmem:[%s647] ss:$8 sm:$0x0] %vm304, %v645
        %v650 = vld [vmem:[#allocation7] sm:$0xff]
        %v651 = vld [vmem:[#allocation3] sm:$0xff]
        %v652 = vld [vmem:[#allocation3 + $0x8] sm:$0xff]
        %v653 = vld [vmem:[#allocation3 + $0x10] sm:$0xff]
        %v654 = vld [vmem:[#allocation3 + $0x18] sm:$0xff]
        %v655 = vld [vmem:[#allocation3 + $0x20] sm:$0xff]
        %v656 = vld [vmem:[#allocation3 + $0x28] sm:$0xff]
        %v657 = vld [vmem:[#allocation3 + $0x30] sm:$0xff]
        %v658 = vld [vmem:[#allocation3 + $0x38] sm:$0xff]
        %v659 = vld [vmem:[#allocation3 + $0x40] sm:$0xff]
        %v660 = vld [vmem:[#allocation3 + $0x48] sm:$0xff]
        %v661 = vld [vmem:[#allocation3 + $0x50] sm:$0xff]
        %v662 = vld [vmem:[#allocation3 + $0x58] sm:$0xff]
        %v663 = vld [vmem:[#allocation3 + $0x60] sm:$0xf]
        %v664 = vld [vmem:[#allocation3 + $0x68] sm:$0xf]
        %v665 = vld [vmem:[#allocation3 + $0x70] sm:$0xf]
        %vm666 = vcmask 293888
        %v668 = vsel %vm666, %v650, 0
        %v671 = vsel %vm174, %v663, 0
        %v674 = vsel %vm174, %v664, 0
        %v677 = vsel %vm174, %v665, 0
        %679 = vmatprep.subr.mxu0 0.0
        %680 = vmatpush1.msra.mxu0 0.0
        %681 = vmatprep.subr.mxu0 0.0
        %682 = vmatpush1.msra.mxu0 0.0
        %683 = vmatprep.subr.mxu0 0.0
        %684 = vmatpush1.msra.mxu0 0.0
        %685 = vmatprep.subr.mxu0 0.0
        %686 = vmatpush1.msra.mxu0 0.0
        %687 = vmatprep.subr.mxu0 0.0
        %688 = vmatpush1.msra.mxu0 0.0
        %689 = vmatprep.subr.mxu0 0.0
        %690 = vmatpush1.msra.mxu0 0.0
        %691 = vmatprep.subr.mxu0 0.0
        %692 = vmatpush1.msra.mxu0 0.0
        %693 = vmatprep.subr.mxu0 0.0
        %694 = vmatpush1.msra.mxu0 0.0
        %695 = vmatprep.subr.mxu0 0.0
        %696 = vmatpush1.msra.mxu0 0.0
        %697 = vmatprep.subr.mxu0 0.0
        %698 = vmatpush1.msra.mxu0 0.0
        %699 = vmatprep.subr.mxu0 0.0
        %700 = vmatpush1.msra.mxu0 0.0
        %701 = vmatprep.subr.mxu0 %v674
        %702 = vmatpush1.msra.mxu0 %v671
        %703 = vmatprep.subr.mxu0 %v661
        %704 = vmatpush1.msra.mxu0 %v660
        %705 = vmatprep.subr.mxu0 %v658
        %706 = vmatpush1.msra.mxu0 %v657
        %707 = vmatprep.subr.mxu0 %v655
        %708 = vmatpush1.msra.mxu0 %v654
        %709 = vmatprep.subr.mxu0 %v652
        %710 = vmatpush1.msra.mxu0 %v651
        %711 = vmatprep.subr.mxu0 0.0
        %712 = vmatpush2.msra.mxu0 0.0
        %713 = vmatprep.subr.mxu0 0.0
        %714 = vmatpush2.msra.mxu0 0.0
        %715 = vmatprep.subr.mxu0 0.0
        %716 = vmatpush2.msra.mxu0 0.0
        %717 = vmatprep.subr.mxu0 0.0
        %718 = vmatpush2.msra.mxu0 0.0
        %719 = vmatprep.subr.mxu0 0.0
        %720 = vmatpush2.msra.mxu0 0.0
        %721 = vmatprep.subr.mxu0 0.0
        %722 = vmatpush2.msra.mxu0 0.0
        %723 = vmatprep.subr.mxu0 0.0
        %724 = vmatpush2.msra.mxu0 0.0
        %725 = vmatprep.subr.mxu0 0.0
        %726 = vmatpush2.msra.mxu0 0.0
        %727 = vmatprep.subr.mxu0 0.0
        %728 = vmatpush2.msra.mxu0 0.0
        %729 = vmatprep.subr.mxu0 0.0
        %730 = vmatpush2.msra.mxu0 0.0
        %731 = vmatprep.subr.mxu0 0.0
        %732 = vmatpush2.msra.mxu0 0.0
        %733 = vmatprep.subr.mxu0 0.0
        %734 = vmatpush2.msra.mxu0 0.0
        %735 = vmatprep.subr.mxu0 0.0
        %736 = vmatpush2.msra.mxu0 0.0
        %737 = vmatprep.subr.mxu0 0.0
        %738 = vmatpush2.msra.mxu0 0.0
        %739 = vmatprep.subr.mxu0 0.0
        %740 = vmatpush2.msra.mxu0 0.0
        %741 = vmatprep.subr.mxu0 0.0
        %742 = vmatpush2.msra.mxu0 0.0
        %743 = vmatprep.mubr.f32.mxu0 0.0
        %744 = vmatmul.mubr.f32.gmra.mxu0 %v668
        %v745 = vpop.f32.mrf.mxu0
        %v746 = vadd.f32 0.0, %v745
        %v747 = vpop.f32.mrf.mxu0
        %v748 = vadd.f32 0.0, %v747
        %749 = vdwg.mxu0
        %750 = vmatprep.subr.mxu0 0.0
        %751 = vmatpush1.msra.mxu0 0.0
        %752 = vmatprep.subr.mxu0 0.0
        %753 = vmatpush1.msra.mxu0 0.0
        %754 = vmatprep.subr.mxu0 0.0
        %755 = vmatpush1.msra.mxu0 0.0
        %756 = vmatprep.subr.mxu0 0.0
        %757 = vmatpush1.msra.mxu0 0.0
        %758 = vmatprep.subr.mxu0 0.0
        %759 = vmatpush1.msra.mxu0 0.0
        %760 = vmatprep.subr.mxu0 0.0
        %761 = vmatpush1.msra.mxu0 0.0
        %762 = vmatprep.subr.mxu0 0.0
        %763 = vmatpush1.msra.mxu0 0.0
        %764 = vmatprep.subr.mxu0 0.0
        %765 = vmatpush1.msra.mxu0 0.0
        %766 = vmatprep.subr.mxu0 0.0
        %767 = vmatpush1.msra.mxu0 0.0
        %768 = vmatprep.subr.mxu0 0.0
        %769 = vmatpush1.msra.mxu0 0.0
        %770 = vmatprep.subr.mxu0 0.0
        %771 = vmatpush1.msra.mxu0 0.0
        %772 = vmatprep.subr.mxu0 0.0
        %773 = vmatpush1.msra.mxu0 %v677
        %774 = vmatprep.subr.mxu0 0.0
        %775 = vmatpush1.msra.mxu0 %v662
        %776 = vmatprep.subr.mxu0 0.0
        %777 = vmatpush1.msra.mxu0 %v659
        %778 = vmatprep.subr.mxu0 0.0
        %779 = vmatpush1.msra.mxu0 %v656
        %780 = vmatprep.subr.mxu0 0.0
        %781 = vmatpush1.msra.mxu0 %v653
        %782 = vmatprep.subr.mxu0 0.0
        %783 = vmatpush2.msra.mxu0 0.0
        %784 = vmatprep.subr.mxu0 0.0
        %785 = vmatpush2.msra.mxu0 0.0
        %786 = vmatprep.subr.mxu0 0.0
        %787 = vmatpush2.msra.mxu0 0.0
        %788 = vmatprep.subr.mxu0 0.0
        %789 = vmatpush2.msra.mxu0 0.0
        %790 = vmatprep.subr.mxu0 0.0
        %791 = vmatpush2.msra.mxu0 0.0
        %792 = vmatprep.subr.mxu0 0.0
        %793 = vmatpush2.msra.mxu0 0.0
        %794 = vmatprep.subr.mxu0 0.0
        %795 = vmatpush2.msra.mxu0 0.0
        %796 = vmatprep.subr.mxu0 0.0
        %797 = vmatpush2.msra.mxu0 0.0
        %798 = vmatprep.subr.mxu0 0.0
        %799 = vmatpush2.msra.mxu0 0.0
        %800 = vmatprep.subr.mxu0 0.0
        %801 = vmatpush2.msra.mxu0 0.0
        %802 = vmatprep.subr.mxu0 0.0
        %803 = vmatpush2.msra.mxu0 0.0
        %804 = vmatprep.subr.mxu0 0.0
        %805 = vmatpush2.msra.mxu0 0.0
        %806 = vmatprep.subr.mxu0 0.0
        %807 = vmatpush2.msra.mxu0 0.0
        %808 = vmatprep.subr.mxu0 0.0
        %809 = vmatpush2.msra.mxu0 0.0
        %810 = vmatprep.subr.mxu0 0.0
        %811 = vmatpush2.msra.mxu0 0.0
        %812 = vmatprep.subr.mxu0 0.0
        %813 = vmatpush2.msra.mxu0 0.0
        %814 = vmatprep.mubr.f32.mxu0 0.0
        %815 = vmatmul.mubr.f32.gmra.mxu0 %v668
        %v816 = vpop.f32.mrf.mxu0
        %v817 = vadd.f32 0.0, %v816
        %v818 = vpop.f32.mrf.mxu0
        %819 = vdwg.mxu0
        %820 = vst [vmem:[%s172] sm:$0xff] %v746
        %821 = vst [vmem:[%s172 + $0x8] sm:$0xff] %v748
        %vm822 = vcmask 490496
        %823 = vst.msk [vmem:[%s172 + $0x10] sm:$0xff] %vm822, %v817
        %vm824 = vcmask 523744
        %825 = vst.msk [vmem:[%s172 + $0x10] sm:$0xff] %vm824, 0.0
        %s826 = sand.u32 %s75, 1
        %s827 = scalar_lea.sflag [#allocation6], %s826
        %s828 = sand.u32 %s75, 1
        %s829 = smul.addr %s828, 24
        %s830 = scalar_lea.vmem [#allocation9], %s829
        // Predicated region
        $region37: #{tpu_custom_call.1} parent=27 // pred_check
          %p831 = pneg %p85
        $region38: #{tpu_custom_call.1} parent=27 // pred_check_branch
          %833 = sbr.rel (%p831) target = $region40
        $region39: #{tpu_custom_call.1} parent=27 // pred_region
          %s835 = ssub.s32 384, 384
          %836 = vsyncadd %s827, %s835
          %s837 = smul.addr %s20, 3
          %s838 = smul.addr %s837, 128
          %s839 = scalar_lea.hbm %s2, %s838
          %s841 = sshll.u32 %s830, 4
          %s842 = int_to_ptr.vmem [resolvable:$true] %s841
          %844 = dma.vmem_to_hbm [thread:$0]  %s842, 384, %s839, %s827
        $region40: #{tpu_custom_call.1} parent=27 // pred_fallthru
          _
      $region28: #{tpu_custom_call.1} parent=5 // pred_fallthru
        _
      %p845 = scmp.le.s32.totalorder 2, %s15
      // Predicated region
      $region41: #{tpu_custom_call.1} parent=5 // pred_check
        %p846 = pneg %p845
      $region42: #{tpu_custom_call.1} parent=5 // pred_check_branch
        %848 = sbr.rel (%p846) target = $region44
      $region43: #{tpu_custom_call.1} parent=5 // pred_region
        %s849 = ssub.s32 %s15, 2
        // Predicated region
        $region45: #{tpu_custom_call.1} parent=43 // pred_check
          %p850 = pneg %p91
        $region46: #{tpu_custom_call.1} parent=43 // pred_check_branch
          %852 = sbr.rel (%p850) target = $region48
        $region47: #{tpu_custom_call.1} parent=43 // pred_region
          %s853 = sand.u32 %s76, 1
          %s854 = scalar_lea.sflag [#allocation6], %s853
          %s855 = sand.u32 %s76, 1
          %s856 = smul.addr %s855, 24
          %s857 = scalar_lea.vmem [#allocation9], %s856
          %858 = dma.done %s854, 384
        $region48: #{tpu_custom_call.1} parent=43 // pred_fallthru
          _
      $region44: #{tpu_custom_call.1} parent=5 // pred_fallthru
        _
    $region6: #{tpu_custom_call.1} parent=1 // loop_footer
      %s19 = sadd.s32 1, %s15
    $region7: #{tpu_custom_call.1} parent=1 // loop_footer_branch
      %14 = sbr.rel target = $region3
    $region8: #{tpu_custom_call.1} parent=1 // loop_exit
      _
    %859 = vsyncpa [#allocation5], 1
    %s860 = scalar_lea.sflag [#allocation5], 1
    %861 = vsyncpa %s860, 1
    %862 = vsyncpa [#allocation8], 1
    %863 = vsyncpa [#allocation6], 1
    %s864 = scalar_lea.sflag [#allocation6], 1
    %865 = vsyncpa %s864, 1

</llo_original>
